<compile_context>
chip_gen: v7x
topology: tpu7x:2x2x1
jax: 0.10.0
libtpu: 0.0.40
codegen_flags: <defaults>
</compile_context>

<pallas_src>
import functools

import jax
import jax.numpy as jnp
from jax import lax
from jax.experimental import pallas as pl
from jax.experimental.pallas import tpu as pltpu

LANE = 128
SUBLANE_ALIGN = 16      # safe sublane multiple for both f32 and bf16 blocks
ROW_CHUNK = 256         # in-kernel sub-tile of the batch tile


def _round_up(x, m):
    return ((x + m - 1) // m) * m


def _cdiv(a, b):
    return (a + b - 1) // b


# ----------------------------------------------------------------------------
# Fused Pallas kernel: whole MLP + dueling combine + softmax, one launch.
# ----------------------------------------------------------------------------
def _fused_net_kernel(*refs, n_layers, action_dim, use_softmax, row_chunk):
    """refs = [x_ref, w_0, b_0, ..., w_{L-1}, b_{L-1}, o_ref].

    Layers 0..L-2 are Linear+ReLU; layer L-1 is the packed final Linear whose
    output columns are [Q(0:A) | V(A) | exact zero padding]  (softmax=False)
    or [Q(0:A) | exact zero padding]                          (softmax=True).
    """
    x_ref = refs[0]
    o_ref = refs[-1]
    wb_refs = refs[1:-1]
    inv_a = 1.0 / float(action_dim)

    def run_stack(xs):
        # Activations streamed in the wrapper-chosen dtype (bf16 by default);
        # all math / accumulation in f32.
        h = xs.astype(jnp.float32)
        for li in range(n_layers):
            w = wb_refs[2 * li][...]
            b = wb_refs[2 * li + 1][...]
            h = jnp.dot(h, w, preferred_element_type=jnp.float32) + b
            if li < n_layers - 1:
                h = jnp.maximum(h, 0.0)

        if use_softmax:
            # softmax(q - mean(q) + v) == softmax(q): the dueling combine only
            # adds a per-row constant, so the V head / mean were dropped when
            # packing the weights.  Reductions stay on the narrow (chunk, A)
            # slice to avoid 16x more EUP exp work on padded lanes.
            q = h[:, :action_dim]
            m = jnp.max(q, axis=-1, keepdims=True)
            e = jnp.exp(q - m)
            denom = jnp.sum(e, axis=-1, keepdims=True)
            out = e * pl.reciprocal(denom, approx=True)      # EUP vrcp slot
        else:
            # Padded lanes of h are exact zeros, so a full-128-lane row sum
            # equals sum(q) + v  ->  mean(q) without reducing a sub-lane slice.
            row_sum = jnp.sum(h, axis=-1, keepdims=True)
            v = h[:, action_dim:action_dim + 1]
            q = h[:, :action_dim]
            out = q + (v - (row_sum - v) * inv_a)            # q - mean(q) + v
        return out.astype(o_ref.dtype)

    tb = x_ref.shape[0]
    n_chunks = tb // row_chunk
    if n_chunks <= 1:
        o_ref[...] = run_stack(x_ref[...])
    else:
        # Bound activation live ranges: process the batch tile in row_chunk
        # pieces so intermediates are (row_chunk, 128) f32, not (tb, 128).
        def body(ci, carry):
            r0 = pl.multiple_of(ci * row_chunk, row_chunk)
            o_ref[pl.ds(r0, row_chunk), :] = run_stack(
                x_ref[pl.ds(r0, row_chunk), :])
            return carry

        lax.fori_loop(0, n_chunks, body, 0, unroll=True)


# ----------------------------------------------------------------------------
# Parameter construction (deterministic, mirrors Net.__init__ shapes)
# ----------------------------------------------------------------------------
def init_linear(key, f_in, f_out):
    kw, kb = jax.random.split(key)
    scale = 1.0 / jnp.sqrt(jnp.float32(f_in))
    w = jax.random.uniform(kw, (f_in, f_out), jnp.float32, -scale, scale)
    b = jax.random.uniform(kb, (f_out,), jnp.float32, -scale, scale)
    return w, b


def build_net_params(key, input_size, hidden, action_dim, layer_num, dueling):
    params = {"model": [], "Q": [], "V": []}
    key, k = jax.random.split(key)
    params["model"].append(init_linear(k, input_size, hidden))
    for _ in range(layer_num):
        key, k = jax.random.split(key)
        params["model"].append(init_linear(k, hidden, hidden))
    q_layer_num, v_layer_num = dueling
    for _ in range(q_layer_num):
        key, k = jax.random.split(key)
        params["Q"].append(init_linear(k, hidden, hidden))
    for _ in range(v_layer_num):
        key, k = jax.random.split(key)
        params["V"].append(init_linear(k, hidden, hidden))
    key, kq = jax.random.split(key)
    key, kv = jax.random.split(key)
    params["Q"].append(init_linear(kq, hidden, action_dim))   # final Q Linear
    params["V"].append(init_linear(kv, hidden, 1))            # final V Linear
    return params


# ----------------------------------------------------------------------------
# Pack raw (torch-style) params into fused, lane-padded weight slabs.
# ----------------------------------------------------------------------------
def pack_net_params(params, use_softmax):
    hidden = params["model"][0][0].shape[1]
    action_dim = params["Q"][-1][0].shape[1]

    raw = [(w, b) for (w, b) in params["model"]]
    qn = len(params["Q"]) - 1
    vn = len(params["V"]) - 1

    if use_softmax:
        # Shift-invariance of softmax: drop the V path and mean entirely.
        for i in range(qn):
            raw.append(params["Q"][i])
        raw.append(params["Q"][-1])                              # (h, A)
    else:
        assert qn == vn, "fused packing assumes q_layer_num == v_layer_num"
        # Q/V miniblocks: concatenate into one wide matmul per step.
        for i in range(qn):
            wq, bq = params["Q"][i]
            wv, bv = params["V"][i]
            if i == 0:
                w = jnp.concatenate([wq, wv], axis=1)            # (h, 2h)
            else:
                z = jnp.zeros((hidden, hidden), jnp.float32)
                w = jnp.concatenate(
                    [jnp.concatenate([wq, z], axis=1),
                     jnp.concatenate([z, wv], axis=1)], axis=0)  # (2h, 2h)
            raw.append((w, jnp.concatenate([bq, bv], axis=0)))
        # Final Q (h -> A) and V (h -> 1) packed block-diagonally: columns [Q|V].
        wqf, bqf = params["Q"][-1]
        wvf, bvf = params["V"][-1]
        if qn == 0:
            wf = jnp.concatenate([wqf, wvf], axis=1)             # (h, A+1)
        else:
            wf = jnp.concatenate(
                [jnp.concatenate(
                    [wqf, jnp.zeros((hidden, 1), jnp.float32)], axis=1),
                 jnp.concatenate(
                    [jnp.zeros((hidden, action_dim), jnp.float32), wvf], axis=1)],
                axis=0)                                          # (2h, A+1)
        raw.append((wf, jnp.concatenate([bqf, bvf], axis=0)))

    # Zero-pad output (lane) dims to 128; pad input dims of layers > 0 to match
    # the previous layer's padded output.  Layer 0 keeps its true input_size so
    # the streamed activation tile is not inflated in HBM.
    layers = []
    for li, (w, b) in enumerate(raw):
        fi, fo = w.shape
        fi_p = fi if li == 0 else _round_up(fi, LANE)
        fo_p = _round_up(fo, LANE)
        wp = jnp.pad(w, ((0, fi_p - fi), (0, fo_p - fo)))
        bp = jnp.pad(b, (0, fo_p - fo)).reshape(1, fo_p)
        layers.append((wp, bp))
    return {"layers": layers, "action_dim": action_dim, "softmax": use_softmax}


# ----------------------------------------------------------------------------
# Forward pass: one fused pallas_call, batch-tiled grid (no wrapper padding).
# ----------------------------------------------------------------------------
def net_forward_pallas(packed, s, batch_tile=2048, min_grid_steps=4,
                       stream_dtype=jnp.bfloat16):
    """Returns logits (the module also returns the unchanged `state`)."""
    B = s.shape[0]
    x = s.reshape(B, -1)                    # s.reshape(s.size(0), -1)
    if x.dtype != stream_dtype:
        # bf16 streaming halves the dominant HBM read; if observations already
        # arrive in a narrower dtype, pass stream_dtype=s.dtype to stream raw
        # and let the kernel cast.
        x = x.astype(stream_dtype)
    input_size = x.shape[1]

    layers = packed["layers"]
    action_dim = packed["action_dim"]
    use_softmax = packed["softmax"]
    n_layers = len(layers)

    # Batch tile: large (amortize per-step pipeline overhead), capped so the
    # grid keeps >= min_grid_steps steps (both v7x TensorCores get work).
    tb_cap = _round_up(_cdiv(B, min_grid_steps), SUBLANE_ALIGN)
    tb = max(SUBLANE_ALIGN, min(_round_up(batch_tile, SUBLANE_ALIGN), tb_cap))
    if tb >= ROW_CHUNK:
        tb = _round_up(tb, ROW_CHUNK)
        chunk = ROW_CHUNK
    else:
        chunk = tb
    grid = (_cdiv(B, tb),)                  # ragged edge handled by Pallas

    flat_inputs = [x]
    in_specs = [pl.BlockSpec((tb, input_size), lambda i: (i, 0))]
    for w, b in layers:
        flat_inputs += [w, b]
        # Constant index_map -> weights stay resident in VMEM across steps.
        in_specs += [pl.BlockSpec(w.shape, lambda i: (0, 0)),
                     pl.BlockSpec(b.shape, lambda i: (0, 0))]

    kernel = functools.partial(
        _fused_net_kernel, n_layers=n_layers, action_dim=action_dim,
        use_softmax=use_softmax, row_chunk=chunk)

    flops = 2 * B * sum(int(w.shape[0]) * int(w.shape[1]) for w, _ in layers)
    transcendentals = B * (action_dim + 1) if use_softmax else 0
    bytes_accessed = (B * input_size * x.dtype.itemsize
                      + sum(int(w.size) * 4 + int(b.size) * 4 for w, b in layers)
                      + B * action_dim * 4)

    out = pl.pallas_call(
        kernel,
        out_shape=jax.ShapeDtypeStruct((B, action_dim), jnp.float32),
        grid=grid,
        in_specs=in_specs,
        # Keep the narrow (tb, A) output: total output bytes are tiny, padding
        # to 128 lanes would 16x output HBM traffic for no gain.
        out_specs=pl.BlockSpec((tb, action_dim), lambda i: (i, 0)),
        compiler_params=pltpu.CompilerParams(
            dimension_semantics=("parallel",)),
        cost_estimate=pl.CostEstimate(
            flops=flops, transcendentals=transcendentals,
            bytes_accessed=bytes_accessed),
    )(*flat_inputs)
    return out


# Pure-JAX reference for sanity checking (mirrors torch semantics).
def net_forward_ref(params, s, softmax):
    B = s.shape[0]
    x = s.astype(jnp.float32).reshape(B, -1)
    for w, b in params["model"]:
        x = jnp.maximum(x @ w + b, 0.0)
    q = x
    for w, b in params["Q"][:-1]:
        q = jnp.maximum(q @ w + b, 0.0)
    wq, bq = params["Q"][-1]
    q = q @ wq + bq
    v = x
    for w, b in params["V"][:-1]:
        v = jnp.maximum(v @ w + b, 0.0)
    wv, bv = params["V"][-1]
    v = v @ wv + bv
    logits = q - jnp.mean(q, axis=1, keepdims=True) + v
    if softmax:
        logits = jax.nn.softmax(logits, axis=-1)
    return logits


if __name__ == "__main__":
    # Small shapes consistent with the module.
    batch = 2
    state_shape = (4, 16)          # flattened input_size = 64
    action_dim = 8
    hidden = 32
    layer_num = 1
    dueling = (1, 1)

    input_size = 1
    for d in state_shape:
        input_size *= d

    key = jax.random.PRNGKey(0)
    k_params, k_small, k_large = jax.random.split(key, 3)

    params = build_net_params(
        k_params, input_size=input_size, hidden=hidden, action_dim=action_dim,
        layer_num=layer_num, dueling=dueling)

    s_small = jax.random.normal(k_small, (batch,) + state_shape, jnp.float32)
    # Larger batch exercises multi-step grid, the ragged edge block (masked
    # writes) and the in-kernel 256-row chunk loop.
    s_large = jax.random.normal(k_large, (1030,) + state_shape, jnp.float32)

    for use_softmax in (True, False):       # False validates the dueling path
        packed = pack_net_params(params, use_softmax)
        for s in (s_small, s_large):
            out = jax.block_until_ready(net_forward_pallas(packed, s))
            ref = net_forward_ref(params, s, softmax=use_softmax)
            assert out.shape == ref.shape
            # Tolerance covers bf16 activation streaming (~1e-3) and the
            # approximate EUP reciprocal in the softmax denominator (~1e-3).
            assert jnp.allclose(out, ref, atol=1e-2, rtol=1e-2), (
                f"mismatch vs reference (softmax={use_softmax}, B={s.shape[0]})")

    print("KERNEL_OK")
</pallas_src>

<mosaic_0001>
module attributes {stable_mosaic.version = 11 : i64} {
  func.func @_fused_net_kernel(%arg0: i32, %arg1: memref<16x64xbf16, #tpu.memory_space<vmem>>, %arg2: memref<64x128xf32, #tpu.memory_space<vmem>>, %arg3: memref<1x128xf32, #tpu.memory_space<vmem>>, %arg4: memref<128x128xf32, #tpu.memory_space<vmem>>, %arg5: memref<1x128xf32, #tpu.memory_space<vmem>>, %arg6: memref<128x128xf32, #tpu.memory_space<vmem>>, %arg7: memref<1x128xf32, #tpu.memory_space<vmem>>, %arg8: memref<128x128xf32, #tpu.memory_space<vmem>>, %arg9: memref<1x128xf32, #tpu.memory_space<vmem>>, %arg10: memref<16x8xf32, #tpu.memory_space<vmem>>) attributes {dimension_semantics = [#tpu.dimension_semantics<parallel>], iteration_bounds = array<i64: 1>, scalar_prefetch = 0 : i64, scratch_operands = 0 : i64, tpu.core_type = #tpu.core_type<tc>, window_params = [{transform_indices = @transform_0, window_bounds = array<i64: 16, 64>}, {pipeline_mode = #tpu.pipeline_mode<synchronous>, transform_indices = @transform_1, window_bounds = array<i64: 64, 128>}, {pipeline_mode = #tpu.pipeline_mode<synchronous>, transform_indices = @transform_2, window_bounds = array<i64: 1, 128>}, {pipeline_mode = #tpu.pipeline_mode<synchronous>, transform_indices = @transform_3, window_bounds = array<i64: 128, 128>}, {pipeline_mode = #tpu.pipeline_mode<synchronous>, transform_indices = @transform_4, window_bounds = array<i64: 1, 128>}, {pipeline_mode = #tpu.pipeline_mode<synchronous>, transform_indices = @transform_5, window_bounds = array<i64: 128, 128>}, {pipeline_mode = #tpu.pipeline_mode<synchronous>, transform_indices = @transform_6, window_bounds = array<i64: 1, 128>}, {pipeline_mode = #tpu.pipeline_mode<synchronous>, transform_indices = @transform_7, window_bounds = array<i64: 128, 128>}, {pipeline_mode = #tpu.pipeline_mode<synchronous>, transform_indices = @transform_8, window_bounds = array<i64: 1, 128>}, {transform_indices = @transform_9, window_bounds = array<i64: 16, 8>}]} {
    %c0 = arith.constant 0 : index
    %c0_0 = arith.constant 0 : index
    %0 = vector.load %arg1[%c0, %c0_0] : memref<16x64xbf16, #tpu.memory_space<vmem>>, vector<16x64xbf16>
    %1 = arith.extf %0 : vector<16x64xbf16> to vector<16x64xf32>
    %c0_1 = arith.constant 0 : index
    %c0_2 = arith.constant 0 : index
    %2 = vector.load %arg2[%c0_1, %c0_2] : memref<64x128xf32, #tpu.memory_space<vmem>>, vector<64x128xf32>
    %c0_3 = arith.constant 0 : index
    %c0_4 = arith.constant 0 : index
    %3 = vector.load %arg3[%c0_3, %c0_4] : memref<1x128xf32, #tpu.memory_space<vmem>>, vector<1x128xf32>
    %cst = arith.constant dense<0.000000e+00> : vector<16x128xf32>
    %4 = tpu.matmul %1, %2, %cst {dimension_numbers = #tpu.dot_dimension_numbers<[1], [0], [0], [1], [0, 0, 1, 1], [], []>} : vector<16x64xf32>, vector<64x128xf32>, vector<16x128xf32> -> vector<16x128xf32>
    %5 = vector.broadcast %3 : vector<1x128xf32> to vector<16x128xf32>
    %6 = arith.addf %4, %5 : vector<16x128xf32>
    %cst_5 = arith.constant 0.000000e+00 : f32
    %7 = vector.broadcast %cst_5 : f32 to vector<16x128xf32>
    %8 = arith.maximumf %6, %7 : vector<16x128xf32>
    %c0_6 = arith.constant 0 : index
    %c0_7 = arith.constant 0 : index
    %9 = vector.load %arg4[%c0_6, %c0_7] : memref<128x128xf32, #tpu.memory_space<vmem>>, vector<128x128xf32>
    %c0_8 = arith.constant 0 : index
    %c0_9 = arith.constant 0 : index
    %10 = vector.load %arg5[%c0_8, %c0_9] : memref<1x128xf32, #tpu.memory_space<vmem>>, vector<1x128xf32>
    %cst_10 = arith.constant dense<0.000000e+00> : vector<16x128xf32>
    %11 = tpu.matmul %8, %9, %cst_10 {dimension_numbers = #tpu.dot_dimension_numbers<[1], [0], [0], [1], [0, 0, 1, 1], [], []>} : vector<16x128xf32>, vector<128x128xf32>, vector<16x128xf32> -> vector<16x128xf32>
    %12 = vector.broadcast %10 : vector<1x128xf32> to vector<16x128xf32>
    %13 = arith.addf %11, %12 : vector<16x128xf32>
    %cst_11 = arith.constant 0.000000e+00 : f32
    %14 = vector.broadcast %cst_11 : f32 to vector<16x128xf32>
    %15 = arith.maximumf %13, %14 : vector<16x128xf32>
    %c0_12 = arith.constant 0 : index
    %c0_13 = arith.constant 0 : index
    %16 = vector.load %arg6[%c0_12, %c0_13] : memref<128x128xf32, #tpu.memory_space<vmem>>, vector<128x128xf32>
    %c0_14 = arith.constant 0 : index
    %c0_15 = arith.constant 0 : index
    %17 = vector.load %arg7[%c0_14, %c0_15] : memref<1x128xf32, #tpu.memory_space<vmem>>, vector<1x128xf32>
    %cst_16 = arith.constant dense<0.000000e+00> : vector<16x128xf32>
    %18 = tpu.matmul %15, %16, %cst_16 {dimension_numbers = #tpu.dot_dimension_numbers<[1], [0], [0], [1], [0, 0, 1, 1], [], []>} : vector<16x128xf32>, vector<128x128xf32>, vector<16x128xf32> -> vector<16x128xf32>
    %19 = vector.broadcast %17 : vector<1x128xf32> to vector<16x128xf32>
    %20 = arith.addf %18, %19 : vector<16x128xf32>
    %cst_17 = arith.constant 0.000000e+00 : f32
    %21 = vector.broadcast %cst_17 : f32 to vector<16x128xf32>
    %22 = arith.maximumf %20, %21 : vector<16x128xf32>
    %c0_18 = arith.constant 0 : index
    %c0_19 = arith.constant 0 : index
    %23 = vector.load %arg8[%c0_18, %c0_19] : memref<128x128xf32, #tpu.memory_space<vmem>>, vector<128x128xf32>
    %c0_20 = arith.constant 0 : index
    %c0_21 = arith.constant 0 : index
    %24 = vector.load %arg9[%c0_20, %c0_21] : memref<1x128xf32, #tpu.memory_space<vmem>>, vector<1x128xf32>
    %cst_22 = arith.constant dense<0.000000e+00> : vector<16x128xf32>
    %25 = tpu.matmul %22, %23, %cst_22 {dimension_numbers = #tpu.dot_dimension_numbers<[1], [0], [0], [1], [0, 0, 1, 1], [], []>} : vector<16x128xf32>, vector<128x128xf32>, vector<16x128xf32> -> vector<16x128xf32>
    %26 = vector.broadcast %24 : vector<1x128xf32> to vector<16x128xf32>
    %27 = arith.addf %25, %26 : vector<16x128xf32>
    %28 = vector.extract_strided_slice %27 {offsets = [0, 0], sizes = [16, 8], strides = [1, 1]} : vector<16x128xf32> to vector<16x8xf32>
    %cst_23 = arith.constant dense<0xFF800000> : vector<16xf32>
    %29 = vector.multi_reduction <maximumf>, %28, %cst_23 [1] : vector<16x8xf32> to vector<16xf32>
    %30 = vector.shape_cast %29 : vector<16xf32> to vector<16x1xf32>
    %31 = vector.broadcast %30 : vector<16x1xf32> to vector<16x8xf32>
    %32 = arith.subf %28, %31 : vector<16x8xf32>
    %33 = math.exp %32 : vector<16x8xf32>
    %cst_24 = arith.constant dense<0.000000e+00> : vector<16xf32>
    %34 = vector.multi_reduction <add>, %33, %cst_24 [1] : vector<16x8xf32> to vector<16xf32>
    %35 = vector.shape_cast %34 : vector<16xf32> to vector<16x1xf32>
    %36 = tpu.reciprocal %35 {approx = true} : vector<16x1xf32> -> vector<16x1xf32>
    %37 = vector.broadcast %36 : vector<16x1xf32> to vector<16x8xf32>
    %38 = arith.mulf %33, %37 : vector<16x8xf32>
    %c0_25 = arith.constant 0 : index
    %c0_26 = arith.constant 0 : index
    %39 = vector.load %arg10[%c0_25, %c0_26] : memref<16x8xf32, #tpu.memory_space<vmem>>, vector<16x8xf32>
    tpu.vector_store %arg10[%c0_25, %c0_26], %38 {strides = array<i32>} : memref<16x8xf32, #tpu.memory_space<vmem>>, vector<16x8xf32>,
    return
  }
  func.func @transform_0(%arg0: i32) -> (i32, i32) {
    %c0_i32 = arith.constant 0 : i32
    %c0_i32_0 = arith.constant 0 : i32
    return %arg0, %c0_i32 : i32, i32
  }
  func.func @transform_1(%arg0: i32) -> (i32, i32) {
    %c0_i32 = arith.constant 0 : i32
    %c0_i32_0 = arith.constant 0 : i32
    %c0_i32_1 = arith.constant 0 : i32
    return %c0_i32, %c0_i32_0 : i32, i32
  }
  func.func @transform_2(%arg0: i32) -> (i32, i32) {
    %c0_i32 = arith.constant 0 : i32
    %c0_i32_0 = arith.constant 0 : i32
    %c0_i32_1 = arith.constant 0 : i32
    return %c0_i32, %c0_i32_0 : i32, i32
  }
  func.func @transform_3(%arg0: i32) -> (i32, i32) {
    %c0_i32 = arith.constant 0 : i32
    %c0_i32_0 = arith.constant 0 : i32
    %c0_i32_1 = arith.constant 0 : i32
    return %c0_i32, %c0_i32_0 : i32, i32
  }
  func.func @transform_4(%arg0: i32) -> (i32, i32) {
    %c0_i32 = arith.constant 0 : i32
    %c0_i32_0 = arith.constant 0 : i32
    %c0_i32_1 = arith.constant 0 : i32
    return %c0_i32, %c0_i32_0 : i32, i32
  }
  func.func @transform_5(%arg0: i32) -> (i32, i32) {
    %c0_i32 = arith.constant 0 : i32
    %c0_i32_0 = arith.constant 0 : i32
    %c0_i32_1 = arith.constant 0 : i32
    return %c0_i32, %c0_i32_0 : i32, i32
  }
  func.func @transform_6(%arg0: i32) -> (i32, i32) {
    %c0_i32 = arith.constant 0 : i32
    %c0_i32_0 = arith.constant 0 : i32
    %c0_i32_1 = arith.constant 0 : i32
    return %c0_i32, %c0_i32_0 : i32, i32
  }
  func.func @transform_7(%arg0: i32) -> (i32, i32) {
    %c0_i32 = arith.constant 0 : i32
    %c0_i32_0 = arith.constant 0 : i32
    %c0_i32_1 = arith.constant 0 : i32
    return %c0_i32, %c0_i32_0 : i32, i32
  }
  func.func @transform_8(%arg0: i32) -> (i32, i32) {
    %c0_i32 = arith.constant 0 : i32
    %c0_i32_0 = arith.constant 0 : i32
    %c0_i32_1 = arith.constant 0 : i32
    return %c0_i32, %c0_i32_0 : i32, i32
  }
  func.func @transform_9(%arg0: i32) -> (i32, i32) {
    %c0_i32 = arith.constant 0 : i32
    %c0_i32_0 = arith.constant 0 : i32
    return %arg0, %c0_i32 : i32, i32
  }
}

</mosaic_0001>

<llo_original>
// kernel: tpu_custom_call.1
$region0: #{tpu_custom_call.1}
  #allocation0 [shape = 'u32[]', space=smem, size = 0x4, offset = 0x4, fixed_abs, tag = 'smem constant byte address 0x4 - core index']
  #allocation1 [shape = 'u32[144,128]{1,0:T(1,128)}', space=vmem, size = 0x12000, scoped, tag = 'internal scratch']
  %s0 = inlined_call_operand.hbm [shape: bf16[2,64], index: 0, kind: input, shape index: {}]
  %s1 = inlined_call_operand.hbm [shape: f32[64,128], index: 1, kind: input, shape index: {}]
  %s2 = inlined_call_operand.vmem [shape: f32[1,128], index: 2, kind: input, shape index: {}]
  %s3 = inlined_call_operand.hbm [shape: f32[128,128], index: 3, kind: input, shape index: {}]
  %s4 = inlined_call_operand.vmem [shape: f32[1,128], index: 4, kind: input, shape index: {}]
  %s5 = inlined_call_operand.hbm [shape: f32[128,128], index: 5, kind: input, shape index: {}]
  %s6 = inlined_call_operand.vmem [shape: f32[1,128], index: 6, kind: input, shape index: {}]
  %s7 = inlined_call_operand.hbm [shape: f32[128,128], index: 7, kind: input, shape index: {}]
  %s8 = inlined_call_operand.vmem [shape: f32[1,128], index: 8, kind: input, shape index: {}]
  %s9 = inlined_call_operand.hbm [shape: f32[2,8], index: 9, kind: output, shape index: {}]
  %s10 = sld [smem:[#allocation0]]
  $region66: #{tpu_custom_call.1} parent=0
    _
  %s12 = ssub.s32 1, %s10
  %s13 = scalar_select 0, %s12, %s10
  $region1: #{tpu_custom_call.1} parent=0
    #allocation2 [shape = 'u8[4096]{0}', space=vmem, size = 0x1000, scoped, tag = 'input window, operand 0, single buffered']
    #allocation3 [shape = 's32[1]{0}', space=sflag, size = 0x4, scoped, tag = 'scoped memory for tpu_custom_call.1']
    #allocation4 [shape = 's32[1]{0}', space=sflag, size = 0x4, scoped, tag = 'scoped memory for tpu_custom_call.1']
    #allocation5 [shape = 'u8[32768]{0}', space=vmem, size = 0x8000, scoped, tag = 'input window, operand 1, single buffered']
    #allocation6 [shape = 's32[1]{0}', space=sflag, size = 0x4, scoped, tag = 'scoped memory for tpu_custom_call.1']
    #allocation7 [shape = 'u8[65536]{0}', space=vmem, size = 0x10000, scoped, tag = 'input window, operand 3, single buffered']
    #allocation8 [shape = 'u8[65536]{0}', space=vmem, size = 0x10000, scoped, tag = 'input window, operand 5, single buffered']
    #allocation9 [shape = 's32[1]{0}', space=sflag, size = 0x4, scoped, tag = 'scoped memory for tpu_custom_call.1']
    #allocation10 [shape = 'u8[65536]{0}', space=vmem, size = 0x10000, scoped, tag = 'input window, operand 7, single buffered']
    #allocation11 [shape = 'u8[8192]{0}', space=vmem, size = 0x2000, scoped, tag = 'output window, operand 0, single buffered']
    %14 = vsyncpa [#allocation3], 0
    %15 = vsyncpa [#allocation6], 0
    %16 = vsyncpa [#allocation9], 0
    %17 = vsyncpa [#allocation4], 0
    // Predicated region
    $region2: #{tpu_custom_call.1} parent=1 // pred_check
      _
    $region3: #{tpu_custom_call.1} parent=1 // pred_check_branch
      %19 = sbr.rel (0) target = $region5
    $region4: #{tpu_custom_call.1} parent=1 // pred_region
      %s21 = ssub.s32 128, 16
      %22 = vsyncadd [#allocation3], %s21
      %s23 = sshll.u32 [#allocation2], 4
      %s24 = int_to_ptr.vmem [resolvable:$true] %s23
      %29 = dma.hbm_to_vmem [thread:$0]  %s0, 16, %s24, [#allocation3], 16, 16, 1
    $region5: #{tpu_custom_call.1} parent=1 // pred_fallthru
      _
    // Predicated region
    $region6: #{tpu_custom_call.1} parent=1 // pred_check
      _
    $region7: #{tpu_custom_call.1} parent=1 // pred_check_branch
      %31 = sbr.rel (0) target = $region9
    $region8: #{tpu_custom_call.1} parent=1 // pred_region
      %s33 = ssub.s32 1024, 1024
      %34 = vsyncadd [#allocation6], %s33
      %s35 = sshll.u32 [#allocation5], 4
      %s36 = int_to_ptr.vmem [resolvable:$true] %s35
      %41 = dma.hbm_to_vmem [thread:$0]  %s1, 1024, %s36, [#allocation6], 128, 128, 8
    $region9: #{tpu_custom_call.1} parent=1 // pred_fallthru
      _
    // Predicated region
    $region10: #{tpu_custom_call.1} parent=1 // pred_check
      _
    $region11: #{tpu_custom_call.1} parent=1 // pred_check_branch
      %43 = sbr.rel (0) target = $region13
    $region12: #{tpu_custom_call.1} parent=1 // pred_region
      _
    $region13: #{tpu_custom_call.1} parent=1 // pred_fallthru
      _
    // Predicated region
    $region14: #{tpu_custom_call.1} parent=1 // pred_check
      _
    $region15: #{tpu_custom_call.1} parent=1 // pred_check_branch
      %45 = sbr.rel (0) target = $region17
    $region16: #{tpu_custom_call.1} parent=1 // pred_region
      %s47 = ssub.s32 2048, 2048
      %48 = vsyncadd [#allocation6], %s47
      %s49 = sshll.u32 [#allocation7], 4
      %s50 = int_to_ptr.vmem [resolvable:$true] %s49
      %55 = dma.hbm_to_vmem [thread:$0]  %s3, 2048, %s50, [#allocation6], 128, 128, 8
    $region17: #{tpu_custom_call.1} parent=1 // pred_fallthru
      _
    // Predicated region
    $region18: #{tpu_custom_call.1} parent=1 // pred_check
      _
    $region19: #{tpu_custom_call.1} parent=1 // pred_check_branch
      %57 = sbr.rel (0) target = $region21
    $region20: #{tpu_custom_call.1} parent=1 // pred_region
      _
    $region21: #{tpu_custom_call.1} parent=1 // pred_fallthru
      _
    // Predicated region
    $region22: #{tpu_custom_call.1} parent=1 // pred_check
      _
    $region23: #{tpu_custom_call.1} parent=1 // pred_check_branch
      %59 = sbr.rel (0) target = $region25
    $region24: #{tpu_custom_call.1} parent=1 // pred_region
      %s61 = ssub.s32 2048, 2048
      %62 = vsyncadd [#allocation9], %s61
      %s63 = sshll.u32 [#allocation8], 4
      %s64 = int_to_ptr.vmem [resolvable:$true] %s63
      %69 = dma.hbm_to_vmem [thread:$0]  %s5, 2048, %s64, [#allocation9], 128, 128, 8
    $region25: #{tpu_custom_call.1} parent=1 // pred_fallthru
      _
    // Predicated region
    $region26: #{tpu_custom_call.1} parent=1 // pred_check
      _
    $region27: #{tpu_custom_call.1} parent=1 // pred_check_branch
      %71 = sbr.rel (0) target = $region29
    $region28: #{tpu_custom_call.1} parent=1 // pred_region
      _
    $region29: #{tpu_custom_call.1} parent=1 // pred_fallthru
      _
    // Predicated region
    $region30: #{tpu_custom_call.1} parent=1 // pred_check
      _
    $region31: #{tpu_custom_call.1} parent=1 // pred_check_branch
      %73 = sbr.rel (0) target = $region33
    $region32: #{tpu_custom_call.1} parent=1 // pred_region
      %s75 = ssub.s32 2048, 2048
      %76 = vsyncadd [#allocation9], %s75
      %s77 = sshll.u32 [#allocation10], 4
      %s78 = int_to_ptr.vmem [resolvable:$true] %s77
      %83 = dma.hbm_to_vmem [thread:$0]  %s7, 2048, %s78, [#allocation9], 128, 128, 8
    $region33: #{tpu_custom_call.1} parent=1 // pred_fallthru
      _
    // Predicated region
    $region34: #{tpu_custom_call.1} parent=1 // pred_check
      _
    $region35: #{tpu_custom_call.1} parent=1 // pred_check_branch
      %85 = sbr.rel (0) target = $region37
    $region36: #{tpu_custom_call.1} parent=1 // pred_region
      _
    $region37: #{tpu_custom_call.1} parent=1 // pred_fallthru
      _
    // Predicated region
    $region38: #{tpu_custom_call.1} parent=1 // pred_check
      _
    $region39: #{tpu_custom_call.1} parent=1 // pred_check_branch
      %87 = sbr.rel (0) target = $region41
    $region40: #{tpu_custom_call.1} parent=1 // pred_region
      %88 = dma.done [#allocation3], 128
    $region41: #{tpu_custom_call.1} parent=1 // pred_fallthru
      _
    // Predicated region
    $region42: #{tpu_custom_call.1} parent=1 // pred_check
      _
    $region43: #{tpu_custom_call.1} parent=1 // pred_check_branch
      %90 = sbr.rel (0) target = $region45
    $region44: #{tpu_custom_call.1} parent=1 // pred_region
      %91 = dma.done [#allocation6], 1024
    $region45: #{tpu_custom_call.1} parent=1 // pred_fallthru
      _
    // Predicated region
    $region46: #{tpu_custom_call.1} parent=1 // pred_check
      _
    $region47: #{tpu_custom_call.1} parent=1 // pred_check_branch
      %93 = sbr.rel (0) target = $region49
    $region48: #{tpu_custom_call.1} parent=1 // pred_region
      %94 = dma.done [#allocation6], 2048
    $region49: #{tpu_custom_call.1} parent=1 // pred_fallthru
      _
    // Predicated region
    $region50: #{tpu_custom_call.1} parent=1 // pred_check
      _
    $region51: #{tpu_custom_call.1} parent=1 // pred_check_branch
      %96 = sbr.rel (0) target = $region53
    $region52: #{tpu_custom_call.1} parent=1 // pred_region
      %97 = dma.done [#allocation9], 2048
    $region53: #{tpu_custom_call.1} parent=1 // pred_fallthru
      _
    // Predicated region
    $region54: #{tpu_custom_call.1} parent=1 // pred_check
      _
    $region55: #{tpu_custom_call.1} parent=1 // pred_check_branch
      %99 = sbr.rel (0) target = $region57
    $region56: #{tpu_custom_call.1} parent=1 // pred_region
      %100 = dma.done [#allocation9], 2048
    $region57: #{tpu_custom_call.1} parent=1 // pred_fallthru
      _
    %v101 = vld [vmem:[#allocation2] sm:$0x1]
    %v102 = vld [vmem:[#allocation2 + $0x1] sm:$0x1]
    %v103 = vld [vmem:[#allocation2 + $0x2] sm:$0x1]
    %v104 = vld [vmem:[#allocation2 + $0x3] sm:$0x1]
    %v105 = vld [vmem:[#allocation2 + $0x4] sm:$0x1]
    %v106 = vld [vmem:[#allocation2 + $0x5] sm:$0x1]
    %v107 = vld [vmem:[#allocation2 + $0x6] sm:$0x1]
    %v108 = vld [vmem:[#allocation2 + $0x7] sm:$0x1]
    %v109 = vunpack.c.l.bf16 %v101
    %v110 = vunpack.c.l.bf16 %v102
    %v111 = vunpack.c.l.bf16 %v103
    %v112 = vunpack.c.l.bf16 %v104
    %v113 = vunpack.c.l.bf16 %v105
    %v114 = vunpack.c.l.bf16 %v106
    %v115 = vunpack.c.l.bf16 %v107
    %v116 = vunpack.c.l.bf16 %v108
    %v117 = vld [vmem:[#allocation5] sm:$0xff]
    %v118 = vld [vmem:[#allocation5 + $0x8] sm:$0xff]
    %v119 = vld [vmem:[#allocation5 + $0x10] sm:$0xff]
    %v120 = vld [vmem:[#allocation5 + $0x18] sm:$0xff]
    %v121 = vld [vmem:[#allocation5 + $0x20] sm:$0xff]
    %v122 = vld [vmem:[#allocation5 + $0x28] sm:$0xff]
    %v123 = vld [vmem:[#allocation5 + $0x30] sm:$0xff]
    %v124 = vld [vmem:[#allocation5 + $0x38] sm:$0xff]
    %v125 = vld [vmem:[%s2] sm:$0x1]
    %v127 = vlaneseq
    %v128 = vshrl.u32 %v127, 7
    %v129 = vsub.s32 0, %v128
    %v130 = vrot.slane %v125, %v129
    %v140 = vcombine.low %v109, %v110
    %v141 = vcombine.low %v111, %v112
    %v143 = vunpack.c.l.s4 1983009808
    %v144 = vunpack.c.0.s8 %v143
    %v145 = vlaneseq
    %v146 = vshrl.u32 %v145, 7
    %v147 = vsub.s32 %v144, %v146
    %v148 = vrot.slane %v140, %v147
    %v150 = vunpack.c.l.s4 1983009808
    %v151 = vunpack.c.0.s8 %v150
    %v152 = vlaneseq
    %v153 = vshrl.u32 %v152, 7
    %v154 = vsub.s32 %v151, %v153
    %v155 = vrot.slane %v141, %v154
    %v156 = vcombine.low %v148, %v155
    %v157 = vcombine.low %v113, %v114
    %v158 = vcombine.low %v115, %v116
    %v160 = vunpack.c.l.s4 1983009808
    %v161 = vunpack.c.0.s8 %v160
    %v162 = vlaneseq
    %v163 = vshrl.u32 %v162, 7
    %v164 = vsub.s32 %v161, %v163
    %v165 = vrot.slane %v157, %v164
    %v167 = vunpack.c.l.s4 1983009808
    %v168 = vunpack.c.0.s8 %v167
    %v169 = vlaneseq
    %v170 = vshrl.u32 %v169, 7
    %v171 = vsub.s32 %v168, %v170
    %v172 = vrot.slane %v158, %v171
    %v173 = vcombine.low %v165, %v172
    %vm174 = vcmask 523264
    %v175 = vsel %vm174, %v156, 0
    %v177 = vsel %vm174, %v173, 0
    %179 = vmatprep.subr.mxu0 0.0
    %180 = vmatpush1.msra.mxu0 %v117
    %181 = vmatprep.subr.mxu0 0.0
    %182 = vmatpush1.msra.mxu0 %v118
    %183 = vmatprep.subr.mxu0 0.0
    %184 = vmatpush1.msra.mxu0 %v119
    %185 = vmatprep.subr.mxu0 0.0
    %186 = vmatpush1.msra.mxu0 %v120
    %187 = vmatprep.subr.mxu0 0.0
    %188 = vmatpush1.msra.mxu0 %v121
    %189 = vmatprep.subr.mxu0 0.0
    %190 = vmatpush1.msra.mxu0 %v122
    %191 = vmatprep.subr.mxu0 0.0
    %192 = vmatpush1.msra.mxu0 %v123
    %193 = vmatprep.subr.mxu0 0.0
    %194 = vmatpush1.msra.mxu0 %v124
    %195 = vmatprep.subr.mxu0 0.0
    %196 = vmatpush1.msra.mxu0 0.0
    %197 = vmatprep.subr.mxu0 0.0
    %198 = vmatpush1.msra.mxu0 0.0
    %199 = vmatprep.subr.mxu0 0.0
    %200 = vmatpush1.msra.mxu0 0.0
    %201 = vmatprep.subr.mxu0 0.0
    %202 = vmatpush1.msra.mxu0 0.0
    %203 = vmatprep.subr.mxu0 0.0
    %204 = vmatpush1.msra.mxu0 0.0
    %205 = vmatprep.subr.mxu0 0.0
    %206 = vmatpush1.msra.mxu0 0.0
    %207 = vmatprep.subr.mxu0 0.0
    %208 = vmatpush1.msra.mxu0 0.0
    %209 = vmatprep.subr.mxu0 0.0
    %210 = vmatpush1.msra.mxu0 0.0
    %211 = vmatprep.subr.mxu0 0.0
    %212 = vmatpush1.msra.mxu0 0.0
    %213 = vmatprep.subr.mxu0 0.0
    %214 = vmatpush1.msra.mxu0 0.0
    %215 = vmatprep.subr.mxu0 0.0
    %216 = vmatpush1.msra.mxu0 0.0
    %217 = vmatprep.subr.mxu0 0.0
    %218 = vmatpush1.msra.mxu0 0.0
    %219 = vmatprep.subr.mxu0 0.0
    %220 = vmatpush1.msra.mxu0 0.0
    %221 = vmatprep.subr.mxu0 0.0
    %222 = vmatpush1.msra.mxu0 0.0
    %223 = vmatprep.subr.mxu0 0.0
    %224 = vmatpush1.msra.mxu0 0.0
    %225 = vmatprep.subr.mxu0 0.0
    %226 = vmatpush1.msra.mxu0 0.0
    %227 = vmatprep.subr.mxu0 0.0
    %228 = vmatpush1.msra.mxu0 0.0
    %229 = vmatprep.subr.mxu0 0.0
    %230 = vmatpush1.msra.mxu0 0.0
    %231 = vmatprep.subr.mxu0 0.0
    %232 = vmatpush1.msra.mxu0 0.0
    %233 = vmatprep.subr.mxu0 0.0
    %234 = vmatpush1.msra.mxu0 0.0
    %235 = vmatprep.subr.mxu0 0.0
    %236 = vmatpush1.msra.mxu0 0.0
    %237 = vmatprep.subr.mxu0 0.0
    %238 = vmatpush1.msra.mxu0 0.0
    %239 = vmatprep.subr.mxu0 0.0
    %240 = vmatpush1.msra.mxu0 0.0
    %241 = vmatprep.subr.mxu0 0.0
    %242 = vmatpush1.msra.mxu0 0.0
    %243 = vmatprep.mubr.f32.mxu0 0.0
    %244 = vmatmul.mubr.f32.gmra.mrb[0].mxu0 %v175
    %v245 = vpop.f32.mrb[0].mxu0
    %v246 = vadd.f32 %v130, %v245
    %v247 = vpop.f32.mrb[0].mxu0
    %248 = vmatprep.mubr.f32.mxu0 0.0
    %249 = vmatmul.mubr.f32.gmra.mrb[0].mxu0 %v177
    %v250 = vpop.f32.mrb[0].mxu0
    %v251 = vadd.f32 %v130, %v250
    %v252 = vpop.f32.mrb[0].mxu0
    %253 = vdwg.mxu0
    %v254 = vmax.f32 %v246, 0.0
    %v255 = vmax.f32 %v251, 0.0
    %v256 = vld [vmem:[#allocation7] sm:$0xff]
    %v257 = vld [vmem:[#allocation7 + $0x8] sm:$0xff]
    %v258 = vld [vmem:[#allocation7 + $0x10] sm:$0xff]
    %v259 = vld [vmem:[#allocation7 + $0x18] sm:$0xff]
    %v260 = vld [vmem:[#allocation7 + $0x20] sm:$0xff]
    %v261 = vld [vmem:[#allocation7 + $0x28] sm:$0xff]
    %v262 = vld [vmem:[#allocation7 + $0x30] sm:$0xff]
    %v263 = vld [vmem:[#allocation7 + $0x38] sm:$0xff]
    %v264 = vld [vmem:[#allocation7 + $0x40] sm:$0xff]
    %v265 = vld [vmem:[#allocation7 + $0x48] sm:$0xff]
    %v266 = vld [vmem:[#allocation7 + $0x50] sm:$0xff]
    %v267 = vld [vmem:[#allocation7 + $0x58] sm:$0xff]
    %v268 = vld [vmem:[#allocation7 + $0x60] sm:$0xff]
    %v269 = vld [vmem:[#allocation7 + $0x68] sm:$0xff]
    %v270 = vld [vmem:[#allocation7 + $0x70] sm:$0xff]
    %v271 = vld [vmem:[#allocation7 + $0x78] sm:$0xff]
    %v272 = vld [vmem:[%s4] sm:$0x1]
    %v274 = vlaneseq
    %v275 = vshrl.u32 %v274, 7
    %v276 = vsub.s32 0, %v275
    %v277 = vrot.slane %v272, %v276
    %279 = vmatprep.subr.mxu0 0.0
    %280 = vmatpush1.msra.mxu0 %v256
    %281 = vmatprep.subr.mxu0 0.0
    %282 = vmatpush1.msra.mxu0 %v257
    %283 = vmatprep.subr.mxu0 0.0
    %284 = vmatpush1.msra.mxu0 %v258
    %285 = vmatprep.subr.mxu0 0.0
    %286 = vmatpush1.msra.mxu0 %v259
    %287 = vmatprep.subr.mxu0 0.0
    %288 = vmatpush1.msra.mxu0 %v260
    %289 = vmatprep.subr.mxu0 0.0
    %290 = vmatpush1.msra.mxu0 %v261
    %291 = vmatprep.subr.mxu0 0.0
    %292 = vmatpush1.msra.mxu0 %v262
    %293 = vmatprep.subr.mxu0 0.0
    %294 = vmatpush1.msra.mxu0 %v263
    %295 = vmatprep.subr.mxu0 0.0
    %296 = vmatpush1.msra.mxu0 %v264
    %297 = vmatprep.subr.mxu0 0.0
    %298 = vmatpush1.msra.mxu0 %v265
    %299 = vmatprep.subr.mxu0 0.0
    %300 = vmatpush1.msra.mxu0 %v266
    %301 = vmatprep.subr.mxu0 0.0
    %302 = vmatpush1.msra.mxu0 %v267
    %303 = vmatprep.subr.mxu0 0.0
    %304 = vmatpush1.msra.mxu0 %v268
    %305 = vmatprep.subr.mxu0 0.0
    %306 = vmatpush1.msra.mxu0 %v269
    %307 = vmatprep.subr.mxu0 0.0
    %308 = vmatpush1.msra.mxu0 %v270
    %309 = vmatprep.subr.mxu0 0.0
    %310 = vmatpush1.msra.mxu0 %v271
    %311 = vmatprep.subr.mxu0 0.0
    %312 = vmatpush1.msra.mxu0 0.0
    %313 = vmatprep.subr.mxu0 0.0
    %314 = vmatpush1.msra.mxu0 0.0
    %315 = vmatprep.subr.mxu0 0.0
    %316 = vmatpush1.msra.mxu0 0.0
    %317 = vmatprep.subr.mxu0 0.0
    %318 = vmatpush1.msra.mxu0 0.0
    %319 = vmatprep.subr.mxu0 0.0
    %320 = vmatpush1.msra.mxu0 0.0
    %321 = vmatprep.subr.mxu0 0.0
    %322 = vmatpush1.msra.mxu0 0.0
    %323 = vmatprep.subr.mxu0 0.0
    %324 = vmatpush1.msra.mxu0 0.0
    %325 = vmatprep.subr.mxu0 0.0
    %326 = vmatpush1.msra.mxu0 0.0
    %327 = vmatprep.subr.mxu0 0.0
    %328 = vmatpush1.msra.mxu0 0.0
    %329 = vmatprep.subr.mxu0 0.0
    %330 = vmatpush1.msra.mxu0 0.0
    %331 = vmatprep.subr.mxu0 0.0
    %332 = vmatpush1.msra.mxu0 0.0
    %333 = vmatprep.subr.mxu0 0.0
    %334 = vmatpush1.msra.mxu0 0.0
    %335 = vmatprep.subr.mxu0 0.0
    %336 = vmatpush1.msra.mxu0 0.0
    %337 = vmatprep.subr.mxu0 0.0
    %338 = vmatpush1.msra.mxu0 0.0
    %339 = vmatprep.subr.mxu0 0.0
    %340 = vmatpush1.msra.mxu0 0.0
    %341 = vmatprep.subr.mxu0 0.0
    %342 = vmatpush1.msra.mxu0 0.0
    %343 = vmatprep.mubr.f32.mxu0 0.0
    %344 = vmatmul.mubr.f32.gmra.mrb[0].mxu0 %v254
    %v345 = vpop.f32.mrb[0].mxu0
    %v346 = vadd.f32 %v277, %v345
    %v347 = vpop.f32.mrb[0].mxu0
    %348 = vmatprep.mubr.f32.mxu0 0.0
    %349 = vmatmul.mubr.f32.gmra.mrb[0].mxu0 %v255
    %v350 = vpop.f32.mrb[0].mxu0
    %v351 = vadd.f32 %v277, %v350
    %v352 = vpop.f32.mrb[0].mxu0
    %353 = vdwg.mxu0
    %v354 = vmax.f32 %v346, 0.0
    %v355 = vmax.f32 %v351, 0.0
    %v356 = vld [vmem:[#allocation8] sm:$0xff]
    %v357 = vld [vmem:[#allocation8 + $0x8] sm:$0xff]
    %v358 = vld [vmem:[#allocation8 + $0x10] sm:$0xff]
    %v359 = vld [vmem:[#allocation8 + $0x18] sm:$0xff]
    %v360 = vld [vmem:[#allocation8 + $0x20] sm:$0xff]
    %v361 = vld [vmem:[#allocation8 + $0x28] sm:$0xff]
    %v362 = vld [vmem:[#allocation8 + $0x30] sm:$0xff]
    %v363 = vld [vmem:[#allocation8 + $0x38] sm:$0xff]
    %v364 = vld [vmem:[#allocation8 + $0x40] sm:$0xff]
    %v365 = vld [vmem:[#allocation8 + $0x48] sm:$0xff]
    %v366 = vld [vmem:[#allocation8 + $0x50] sm:$0xff]
    %v367 = vld [vmem:[#allocation8 + $0x58] sm:$0xff]
    %v368 = vld [vmem:[#allocation8 + $0x60] sm:$0xff]
    %v369 = vld [vmem:[#allocation8 + $0x68] sm:$0xff]
    %v370 = vld [vmem:[#allocation8 + $0x70] sm:$0xff]
    %v371 = vld [vmem:[#allocation8 + $0x78] sm:$0xff]
    %v372 = vld [vmem:[%s6] sm:$0x1]
    %v374 = vlaneseq
    %v375 = vshrl.u32 %v374, 7
    %v376 = vsub.s32 0, %v375
    %v377 = vrot.slane %v372, %v376
    %379 = vmatprep.subr.mxu0 0.0
    %380 = vmatpush1.msra.mxu0 %v356
    %381 = vmatprep.subr.mxu0 0.0
    %382 = vmatpush1.msra.mxu0 %v357
    %383 = vmatprep.subr.mxu0 0.0
    %384 = vmatpush1.msra.mxu0 %v358
    %385 = vmatprep.subr.mxu0 0.0
    %386 = vmatpush1.msra.mxu0 %v359
    %387 = vmatprep.subr.mxu0 0.0
    %388 = vmatpush1.msra.mxu0 %v360
    %389 = vmatprep.subr.mxu0 0.0
    %390 = vmatpush1.msra.mxu0 %v361
    %391 = vmatprep.subr.mxu0 0.0
    %392 = vmatpush1.msra.mxu0 %v362
    %393 = vmatprep.subr.mxu0 0.0
    %394 = vmatpush1.msra.mxu0 %v363
    %395 = vmatprep.subr.mxu0 0.0
    %396 = vmatpush1.msra.mxu0 %v364
    %397 = vmatprep.subr.mxu0 0.0
    %398 = vmatpush1.msra.mxu0 %v365
    %399 = vmatprep.subr.mxu0 0.0
    %400 = vmatpush1.msra.mxu0 %v366
    %401 = vmatprep.subr.mxu0 0.0
    %402 = vmatpush1.msra.mxu0 %v367
    %403 = vmatprep.subr.mxu0 0.0
    %404 = vmatpush1.msra.mxu0 %v368
    %405 = vmatprep.subr.mxu0 0.0
    %406 = vmatpush1.msra.mxu0 %v369
    %407 = vmatprep.subr.mxu0 0.0
    %408 = vmatpush1.msra.mxu0 %v370
    %409 = vmatprep.subr.mxu0 0.0
    %410 = vmatpush1.msra.mxu0 %v371
    %411 = vmatprep.subr.mxu0 0.0
    %412 = vmatpush1.msra.mxu0 0.0
    %413 = vmatprep.subr.mxu0 0.0
    %414 = vmatpush1.msra.mxu0 0.0
    %415 = vmatprep.subr.mxu0 0.0
    %416 = vmatpush1.msra.mxu0 0.0
    %417 = vmatprep.subr.mxu0 0.0
    %418 = vmatpush1.msra.mxu0 0.0
    %419 = vmatprep.subr.mxu0 0.0
    %420 = vmatpush1.msra.mxu0 0.0
    %421 = vmatprep.subr.mxu0 0.0
    %422 = vmatpush1.msra.mxu0 0.0
    %423 = vmatprep.subr.mxu0 0.0
    %424 = vmatpush1.msra.mxu0 0.0
    %425 = vmatprep.subr.mxu0 0.0
    %426 = vmatpush1.msra.mxu0 0.0
    %427 = vmatprep.subr.mxu0 0.0
    %428 = vmatpush1.msra.mxu0 0.0
    %429 = vmatprep.subr.mxu0 0.0
    %430 = vmatpush1.msra.mxu0 0.0
    %431 = vmatprep.subr.mxu0 0.0
    %432 = vmatpush1.msra.mxu0 0.0
    %433 = vmatprep.subr.mxu0 0.0
    %434 = vmatpush1.msra.mxu0 0.0
    %435 = vmatprep.subr.mxu0 0.0
    %436 = vmatpush1.msra.mxu0 0.0
    %437 = vmatprep.subr.mxu0 0.0
    %438 = vmatpush1.msra.mxu0 0.0
    %439 = vmatprep.subr.mxu0 0.0
    %440 = vmatpush1.msra.mxu0 0.0
    %441 = vmatprep.subr.mxu0 0.0
    %442 = vmatpush1.msra.mxu0 0.0
    %443 = vmatprep.mubr.f32.mxu0 0.0
    %444 = vmatmul.mubr.f32.gmra.mrb[0].mxu0 %v354
    %v445 = vpop.f32.mrb[0].mxu0
    %v446 = vadd.f32 %v377, %v445
    %v447 = vpop.f32.mrb[0].mxu0
    %448 = vmatprep.mubr.f32.mxu0 0.0
    %449 = vmatmul.mubr.f32.gmra.mrb[0].mxu0 %v355
    %v450 = vpop.f32.mrb[0].mxu0
    %v451 = vadd.f32 %v377, %v450
    %v452 = vpop.f32.mrb[0].mxu0
    %453 = vdwg.mxu0
    %v454 = vmax.f32 %v446, 0.0
    %v455 = vmax.f32 %v451, 0.0
    %v456 = vld [vmem:[#allocation10] sm:$0xff]
    %v457 = vld [vmem:[#allocation10 + $0x8] sm:$0xff]
    %v458 = vld [vmem:[#allocation10 + $0x10] sm:$0xff]
    %v459 = vld [vmem:[#allocation10 + $0x18] sm:$0xff]
    %v460 = vld [vmem:[#allocation10 + $0x20] sm:$0xff]
    %v461 = vld [vmem:[#allocation10 + $0x28] sm:$0xff]
    %v462 = vld [vmem:[#allocation10 + $0x30] sm:$0xff]
    %v463 = vld [vmem:[#allocation10 + $0x38] sm:$0xff]
    %v464 = vld [vmem:[#allocation10 + $0x40] sm:$0xff]
    %v465 = vld [vmem:[#allocation10 + $0x48] sm:$0xff]
    %v466 = vld [vmem:[#allocation10 + $0x50] sm:$0xff]
    %v467 = vld [vmem:[#allocation10 + $0x58] sm:$0xff]
    %v468 = vld [vmem:[#allocation10 + $0x60] sm:$0xff]
    %v469 = vld [vmem:[#allocation10 + $0x68] sm:$0xff]
    %v470 = vld [vmem:[#allocation10 + $0x70] sm:$0xff]
    %v471 = vld [vmem:[#allocation10 + $0x78] sm:$0xff]
    %v472 = vld [vmem:[%s8] sm:$0x1]
    %v474 = vlaneseq
    %v475 = vshrl.u32 %v474, 7
    %v476 = vsub.s32 0, %v475
    %v477 = vrot.slane %v472, %v476
    %479 = vmatprep.subr.mxu0 0.0
    %480 = vmatpush1.msra.mxu0 %v456
    %481 = vmatprep.subr.mxu0 0.0
    %482 = vmatpush1.msra.mxu0 %v457
    %483 = vmatprep.subr.mxu0 0.0
    %484 = vmatpush1.msra.mxu0 %v458
    %485 = vmatprep.subr.mxu0 0.0
    %486 = vmatpush1.msra.mxu0 %v459
    %487 = vmatprep.subr.mxu0 0.0
    %488 = vmatpush1.msra.mxu0 %v460
    %489 = vmatprep.subr.mxu0 0.0
    %490 = vmatpush1.msra.mxu0 %v461
    %491 = vmatprep.subr.mxu0 0.0
    %492 = vmatpush1.msra.mxu0 %v462
    %493 = vmatprep.subr.mxu0 0.0
    %494 = vmatpush1.msra.mxu0 %v463
    %495 = vmatprep.subr.mxu0 0.0
    %496 = vmatpush1.msra.mxu0 %v464
    %497 = vmatprep.subr.mxu0 0.0
    %498 = vmatpush1.msra.mxu0 %v465
    %499 = vmatprep.subr.mxu0 0.0
    %500 = vmatpush1.msra.mxu0 %v466
    %501 = vmatprep.subr.mxu0 0.0
    %502 = vmatpush1.msra.mxu0 %v467
    %503 = vmatprep.subr.mxu0 0.0
    %504 = vmatpush1.msra.mxu0 %v468
    %505 = vmatprep.subr.mxu0 0.0
    %506 = vmatpush1.msra.mxu0 %v469
    %507 = vmatprep.subr.mxu0 0.0
    %508 = vmatpush1.msra.mxu0 %v470
    %509 = vmatprep.subr.mxu0 0.0
    %510 = vmatpush1.msra.mxu0 %v471
    %511 = vmatprep.subr.mxu0 0.0
    %512 = vmatpush1.msra.mxu0 0.0
    %513 = vmatprep.subr.mxu0 0.0
    %514 = vmatpush1.msra.mxu0 0.0
    %515 = vmatprep.subr.mxu0 0.0
    %516 = vmatpush1.msra.mxu0 0.0
    %517 = vmatprep.subr.mxu0 0.0
    %518 = vmatpush1.msra.mxu0 0.0
    %519 = vmatprep.subr.mxu0 0.0
    %520 = vmatpush1.msra.mxu0 0.0
    %521 = vmatprep.subr.mxu0 0.0
    %522 = vmatpush1.msra.mxu0 0.0
    %523 = vmatprep.subr.mxu0 0.0
    %524 = vmatpush1.msra.mxu0 0.0
    %525 = vmatprep.subr.mxu0 0.0
    %526 = vmatpush1.msra.mxu0 0.0
    %527 = vmatprep.subr.mxu0 0.0
    %528 = vmatpush1.msra.mxu0 0.0
    %529 = vmatprep.subr.mxu0 0.0
    %530 = vmatpush1.msra.mxu0 0.0
    %531 = vmatprep.subr.mxu0 0.0
    %532 = vmatpush1.msra.mxu0 0.0
    %533 = vmatprep.subr.mxu0 0.0
    %534 = vmatpush1.msra.mxu0 0.0
    %535 = vmatprep.subr.mxu0 0.0
    %536 = vmatpush1.msra.mxu0 0.0
    %537 = vmatprep.subr.mxu0 0.0
    %538 = vmatpush1.msra.mxu0 0.0
    %539 = vmatprep.subr.mxu0 0.0
    %540 = vmatpush1.msra.mxu0 0.0
    %541 = vmatprep.subr.mxu0 0.0
    %542 = vmatpush1.msra.mxu0 0.0
    %543 = vmatprep.mubr.f32.mxu0 0.0
    %544 = vmatmul.mubr.f32.gmra.mrb[0].mxu0 %v454
    %v545 = vpop.f32.mrb[0].mxu0
    %v546 = vadd.f32 %v477, %v545
    %v547 = vpop.f32.mrb[0].mxu0
    %548 = vmatprep.mubr.f32.mxu0 0.0
    %549 = vmatmul.mubr.f32.gmra.mrb[0].mxu0 %v455
    %v550 = vpop.f32.mrb[0].mxu0
    %v551 = vadd.f32 %v477, %v550
    %v552 = vpop.f32.mrb[0].mxu0
    %553 = vdwg.mxu0
    %vm554 = vcmask 64512
    %v555 = vsel %vm554, %v546, -inf
    %556 = vmax.xlane.f32.xlu0 %v555
    %v557 = vpop.xlane.xlu0 %556
    %v558 = vsel %vm554, %v551, -inf
    %559 = vmax.xlane.f32.xlu0 %v558
    %v560 = vpop.xlane.xlu0 %559
    %v561 = vsub.f32 %v546, %v557
    %v562 = vsub.f32 %v551, %v560
    %v563 = vmul.f32 %v561, 1.442695
    %v564 = vpow.pop %v563
    %v565 = vmul.f32 %v562, 1.442695
    %v566 = vpow.pop %v565
    %v567 = vsel %vm554, %v564, 0.0
    %568 = vadd.xlane.f32.xlu0 %v567
    %v569 = vpop.xlane.xlu0 %568
    %v570 = vsel %vm554, %v566, 0.0
    %571 = vadd.xlane.f32.xlu0 %v570
    %v572 = vpop.xlane.xlu0 %571
    %v573 = vrcp.pop %v569
    %v574 = vrcp.pop %v572
    %v575 = vmul.f32 %v564, %v573
    %v576 = vmul.f32 %v566, %v574
    %577 = vst.msk [vmem:[#allocation11] sm:$0xff] %vm554, %v575
    %578 = vst.msk [vmem:[#allocation11 + $0x8] sm:$0xff] %vm554, %v576
    // Predicated region
    $region58: #{tpu_custom_call.1} parent=1 // pred_check
      _
    $region59: #{tpu_custom_call.1} parent=1 // pred_check_branch
      %580 = sbr.rel (0) target = $region61
    $region60: #{tpu_custom_call.1} parent=1 // pred_region
      %s582 = ssub.s32 256, 32
      %583 = vsyncadd [#allocation4], %s582
      %s584 = sshll.u32 [#allocation11], 4
      %s585 = int_to_ptr.vmem [resolvable:$true] %s584
      %590 = dma.vmem_to_hbm [thread:$0]  %s585, 32, %s9, [#allocation4], 32, 32, 2
    $region61: #{tpu_custom_call.1} parent=1 // pred_fallthru
      _
    // Predicated region
    $region62: #{tpu_custom_call.1} parent=1 // pred_check
      _
    $region63: #{tpu_custom_call.1} parent=1 // pred_check_branch
      %592 = sbr.rel (0) target = $region65
    $region64: #{tpu_custom_call.1} parent=1 // pred_region
      %593 = dma.done [#allocation4], 256
    $region65: #{tpu_custom_call.1} parent=1 // pred_fallthru
      _
    %594 = vsyncpa [#allocation3], 1
    %595 = vsyncpa [#allocation6], 1
    %596 = vsyncpa [#allocation9], 1
    %597 = vsyncpa [#allocation4], 1

</llo_original>
